<compile_context>
chip_gen: v7x
topology: tpu7x:2x2x1
jax: 0.10.0
libtpu: 0.0.40
codegen_flags: <defaults>
</compile_context>

<pallas_src>
import math

import jax
import jax.numpy as jnp
import numpy as np
from jax.experimental import pallas as pl
from jax.experimental.pallas import tpu as pltpu


def _ceil_div(a, b):
    return -(-a // b)


def _make_cat_kernel(TB, L_pad, K_all, n_total, kernel_sizes, filter_nums,
                     aa_num, n_pool):
    """Fused kernel body: one matmul + bias + ReLU + adaptive max-pool."""

    def kernel(x_ref, w_ref, b_ref, o_ref):
        # x_ref: (TB, L_pad, K_all)   im2col'd input windows
        # w_ref: (K_all, n_total)     all branches' taps stacked along K
        # b_ref: (1, n_total)         all branches' biases
        # o_ref: (TB, n_pool, n_total)
        xm = x_ref[...].reshape(TB * L_pad, K_all)       # free: L_pad % 8 == 0
        y = jnp.dot(xm, w_ref[...],
                    preferred_element_type=jnp.float32)  # (TB*L_pad, n_total)
        y = jnp.maximum(y + b_ref[...], 0.0)             # bias + ReLU, once
        y3 = y.reshape(TB, L_pad, n_total)

        col = 0
        for h, fn in zip(kernel_sizes, filter_nums):
            L = aa_num - h + 1                           # valid conv length
            for p in range(n_pool):
                s = (p * L) // n_pool
                e = _ceil_div((p + 1) * L, n_pool)
                o_ref[:, p, col:col + fn] = jnp.max(
                    y3[:, s:e, col:col + fn], axis=1).astype(o_ref.dtype)
            col += fn

    return kernel


def cat_pallas(x, weights, biases, aa_num, feature_num, n_pool=3):
    """Pallas implementation of CAT.forward.

    x:       any shape reshapeable to (-1, feature_num, aa_num)
    weights: list of PyTorch-Conv1d weights, each (filter_num_i, feature_num, h_i)
    biases:  list of (filter_num_i,)
    Returns: list of (B, filter_num_i, n_pool) arrays (PyTorch layout).
    """
    x = x.reshape(-1, feature_num, aa_num)
    B = x.shape[0]

    kernel_sizes = [int(w.shape[2]) for w in weights]
    filter_nums = [int(w.shape[0]) for w in weights]
    n_total = sum(filter_nums)
    h_max = max(kernel_sizes)
    h_min = min(kernel_sizes)

    L_max = aa_num - h_min + 1
    assert aa_num - h_max + 1 >= n_pool, (
        "valid conv length must be >= number of pool bins")

    # Pad the conv-output length axis to a multiple of 8 so the in-kernel
    # batch->M reshape is layout-free.
    L_pad = max(8, _ceil_div(L_max, 8) * 8)
    A_pad = L_pad + h_max - 1
    K_all = h_max * feature_num

    # ---- wrapper-side im2col: (B, A, F) -> (B, L_pad, h_max*F) ----
    xt = jnp.transpose(x, (0, 2, 1))                                 # (B, A, F)
    x_pad = jnp.pad(xt, ((0, 0), (0, A_pad - aa_num), (0, 0)))
    x_win = jnp.concatenate(
        [x_pad[:, k:k + L_pad, :] for k in range(h_max)], axis=-1)   # (B, L_pad, K_all)

    # ---- weight stacking: taps go into the K dimension ----
    w_cols = []
    for w, h, fn in zip(weights, kernel_sizes, filter_nums):
        wt = jnp.transpose(w, (2, 1, 0)).reshape(h * feature_num, fn)  # (h*F, fn)
        wt = jnp.pad(wt, ((0, (h_max - h) * feature_num), (0, 0)))     # zero rows
        w_cols.append(wt)
    w_all = jnp.concatenate(w_cols, axis=1)                          # (K_all, n_total)
    b_all = jnp.concatenate(biases).reshape(1, n_total)              # (1, n_total)

    # ---- batch tiling ----
    # >= 2 grid steps when B >= 2 (v7x megacore), capped so double-buffered
    # blocks stay well under v5e's ~16 MiB scoped VMEM default.
    TB = max(1, min(128, _ceil_div(B, 2)))
    B_pad = _ceil_div(B, TB) * TB
    if B_pad != B:
        # Padded tail rows produce garbage pooled values; sliced off below.
        x_win = jnp.pad(x_win, ((0, B_pad - B), (0, 0), (0, 0)))
    grid = (B_pad // TB,)

    kernel = _make_cat_kernel(TB, L_pad, K_all, n_total, kernel_sizes,
                              filter_nums, aa_num, n_pool)

    in_specs = [
        pl.BlockSpec((TB, L_pad, K_all), lambda b: (b, 0, 0)),
        pl.BlockSpec((K_all, n_total), lambda b: (0, 0)),
        pl.BlockSpec((1, n_total), lambda b: (0, 0)),
    ]
    out_specs = pl.BlockSpec((TB, n_pool, n_total), lambda b: (b, 0, 0))
    out_shape = jax.ShapeDtypeStruct((B_pad, n_pool, n_total), x.dtype)

    out = pl.pallas_call(
        kernel,
        out_shape=out_shape,
        grid_spec=pltpu.PrefetchScalarGridSpec(
            num_scalar_prefetch=0,
            grid=grid,
            in_specs=in_specs,
            out_specs=out_specs,
        ),
        compiler_params=pltpu.CompilerParams(
            dimension_semantics=("parallel",)),
    )(x_win, w_all, b_all)

    # Split per branch, drop batch padding, (B, n_pool, fn) -> (B, fn, n_pool).
    results = []
    col = 0
    for fn in filter_nums:
        results.append(jnp.transpose(out[:B, :, col:col + fn], (0, 2, 1)))
        col += fn
    return results


def cat_reference(x, weights, biases, aa_num, feature_num, n_pool=3):
    """Plain-JAX replica of the PyTorch CAT.forward (correctness check)."""
    x = x.reshape(-1, feature_num, aa_num)
    outs = []
    for w, b in zip(weights, biases):
        y = jax.lax.conv_general_dilated(
            x, w, window_strides=(1,), padding="VALID",
            dimension_numbers=("NCH", "OIH", "NCH"))                 # (B, fn, L)
        y = jnp.maximum(y + b[None, :, None], 0.0)
        L = y.shape[-1]
        bins = []
        for p in range(n_pool):
            s = (p * L) // n_pool
            e = _ceil_div((p + 1) * L, n_pool)
            bins.append(jnp.max(y[..., s:e], axis=-1, keepdims=True))
        outs.append(jnp.concatenate(bins, axis=-1))                  # (B, fn, n_pool)
    return outs


if __name__ == "__main__":
    # Small config consistent with the module: batch=2, feature_num=4,
    # aa_num=16, kernel sizes [2, 3, 4], filter counts [8, 16, 32].
    B = 2
    feature_num = 4
    aa_num = 16
    kernel_size = [2, 3, 4]
    filter_num = [8, 16, 32]

    key = jax.random.PRNGKey(0)
    keys = jax.random.split(key, 1 + 2 * len(kernel_size))

    x = jax.random.normal(keys[0], (B, feature_num, aa_num), dtype=jnp.float32)

    weights, biases = [], []
    for i, h in enumerate(kernel_size):
        kw, kb = keys[1 + 2 * i], keys[2 + 2 * i]
        bound = 1.0 / math.sqrt(feature_num * h)   # nn.Conv1d default init range
        weights.append(jax.random.uniform(
            kw, (filter_num[i], feature_num, h), jnp.float32, -bound, bound))
        biases.append(jax.random.uniform(
            kb, (filter_num[i],), jnp.float32, -bound, bound))

    outs = cat_pallas(x, weights, biases, aa_num, feature_num)
    outs = jax.block_until_ready(outs)

    refs = cat_reference(x, weights, biases, aa_num, feature_num)
    for o, r in zip(outs, refs):
        np.testing.assert_allclose(np.asarray(o), np.asarray(r),
                                   rtol=1e-5, atol=1e-5)
    print("KERNEL_OK")
</pallas_src>

<mosaic_0001>
module attributes {stable_mosaic.version = 11 : i64} {
  func.func @kernel(%arg0: i32, %arg1: memref<1x16x16xf32, #tpu.memory_space<vmem>>, %arg2: memref<16x56xf32, #tpu.memory_space<vmem>>, %arg3: memref<1x56xf32, #tpu.memory_space<vmem>>, %arg4: memref<1x3x56xf32, #tpu.memory_space<vmem>>) attributes {dimension_semantics = [#tpu.dimension_semantics<parallel>], iteration_bounds = array<i64: 2>, scalar_prefetch = 0 : i64, scratch_operands = 0 : i64, tpu.core_type = #tpu.core_type<tc>, window_params = [{transform_indices = @transform_0, window_bounds = array<i64: 1, 16, 16>}, {pipeline_mode = #tpu.pipeline_mode<synchronous>, transform_indices = @transform_1, window_bounds = array<i64: 16, 56>}, {pipeline_mode = #tpu.pipeline_mode<synchronous>, transform_indices = @transform_2, window_bounds = array<i64: 1, 56>}, {transform_indices = @transform_3, window_bounds = array<i64: 1, 3, 56>}]} {
    %c0 = arith.constant 0 : index
    %c0_0 = arith.constant 0 : index
    %c0_1 = arith.constant 0 : index
    %0 = vector.load %arg1[%c0, %c0_0, %c0_1] : memref<1x16x16xf32, #tpu.memory_space<vmem>>, vector<1x16x16xf32>
    %1 = vector.shape_cast %0 : vector<1x16x16xf32> to vector<16x16xf32>
    %c0_2 = arith.constant 0 : index
    %c0_3 = arith.constant 0 : index
    %2 = vector.load %arg2[%c0_2, %c0_3] : memref<16x56xf32, #tpu.memory_space<vmem>>, vector<16x56xf32>
    %cst = arith.constant dense<0.000000e+00> : vector<16x56xf32>
    %3 = tpu.matmul %1, %2, %cst {dimension_numbers = #tpu.dot_dimension_numbers<[1], [0], [0], [1], [0, 0, 1, 1], [], []>} : vector<16x16xf32>, vector<16x56xf32>, vector<16x56xf32> -> vector<16x56xf32>
    %c0_4 = arith.constant 0 : index
    %c0_5 = arith.constant 0 : index
    %4 = vector.load %arg3[%c0_4, %c0_5] : memref<1x56xf32, #tpu.memory_space<vmem>>, vector<1x56xf32>
    %5 = vector.broadcast %4 : vector<1x56xf32> to vector<16x56xf32>
    %6 = arith.addf %3, %5 : vector<16x56xf32>
    %cst_6 = arith.constant 0.000000e+00 : f32
    %7 = vector.broadcast %cst_6 : f32 to vector<16x56xf32>
    %8 = arith.maximumf %6, %7 : vector<16x56xf32>
    %9 = vector.shape_cast %8 : vector<16x56xf32> to vector<1x16x56xf32>
    %10 = vector.extract_strided_slice %9 {offsets = [0, 0, 0], sizes = [1, 5, 8], strides = [1, 1, 1]} : vector<1x16x56xf32> to vector<1x5x8xf32>
    %cst_7 = arith.constant dense<0xFF800000> : vector<1x8xf32>
    %11 = vector.multi_reduction <maximumf>, %10, %cst_7 [1] : vector<1x5x8xf32> to vector<1x8xf32>
    %c0_8 = arith.constant 0 : index
    %c0_9 = arith.constant 0 : index
    %c0_10 = arith.constant 0 : index
    %12 = vector.load %arg4[%c0_8, %c0_9, %c0_10] : memref<1x3x56xf32, #tpu.memory_space<vmem>>, vector<1x1x8xf32>
    %13 = vector.shape_cast %12 : vector<1x1x8xf32> to vector<1x8xf32>
    %14 = vector.shape_cast %11 : vector<1x8xf32> to vector<1x1x8xf32>
    tpu.vector_store %arg4[%c0_8, %c0_9, %c0_10], %14 {strides = array<i32>} : memref<1x3x56xf32, #tpu.memory_space<vmem>>, vector<1x1x8xf32>,
    %15 = vector.extract_strided_slice %9 {offsets = [0, 5, 0], sizes = [1, 5, 8], strides = [1, 1, 1]} : vector<1x16x56xf32> to vector<1x5x8xf32>
    %cst_11 = arith.constant dense<0xFF800000> : vector<1x8xf32>
    %16 = vector.multi_reduction <maximumf>, %15, %cst_11 [1] : vector<1x5x8xf32> to vector<1x8xf32>
    %c0_12 = arith.constant 0 : index
    %c1 = arith.constant 1 : index
    %c0_13 = arith.constant 0 : index
    %17 = vector.load %arg4[%c0_12, %c1, %c0_13] : memref<1x3x56xf32, #tpu.memory_space<vmem>>, vector<1x1x8xf32>
    %18 = vector.shape_cast %17 : vector<1x1x8xf32> to vector<1x8xf32>
    %19 = vector.shape_cast %16 : vector<1x8xf32> to vector<1x1x8xf32>
    tpu.vector_store %arg4[%c0_12, %c1, %c0_13], %19 {strides = array<i32>} : memref<1x3x56xf32, #tpu.memory_space<vmem>>, vector<1x1x8xf32>,
    %20 = vector.extract_strided_slice %9 {offsets = [0, 10, 0], sizes = [1, 5, 8], strides = [1, 1, 1]} : vector<1x16x56xf32> to vector<1x5x8xf32>
    %cst_14 = arith.constant dense<0xFF800000> : vector<1x8xf32>
    %21 = vector.multi_reduction <maximumf>, %20, %cst_14 [1] : vector<1x5x8xf32> to vector<1x8xf32>
    %c0_15 = arith.constant 0 : index
    %c2 = arith.constant 2 : index
    %c0_16 = arith.constant 0 : index
    %22 = vector.load %arg4[%c0_15, %c2, %c0_16] : memref<1x3x56xf32, #tpu.memory_space<vmem>>, vector<1x1x8xf32>
    %23 = vector.shape_cast %22 : vector<1x1x8xf32> to vector<1x8xf32>
    %24 = vector.shape_cast %21 : vector<1x8xf32> to vector<1x1x8xf32>
    tpu.vector_store %arg4[%c0_15, %c2, %c0_16], %24 {strides = array<i32>} : memref<1x3x56xf32, #tpu.memory_space<vmem>>, vector<1x1x8xf32>,
    %25 = vector.extract_strided_slice %9 {offsets = [0, 0, 8], sizes = [1, 5, 16], strides = [1, 1, 1]} : vector<1x16x56xf32> to vector<1x5x16xf32>
    %cst_17 = arith.constant dense<0xFF800000> : vector<1x16xf32>
    %26 = vector.multi_reduction <maximumf>, %25, %cst_17 [1] : vector<1x5x16xf32> to vector<1x16xf32>
    %c0_18 = arith.constant 0 : index
    %c0_19 = arith.constant 0 : index
    %c8 = arith.constant 8 : index
    %27 = vector.load %arg4[%c0_18, %c0_19, %c8] : memref<1x3x56xf32, #tpu.memory_space<vmem>>, vector<1x1x16xf32>
    %28 = vector.shape_cast %27 : vector<1x1x16xf32> to vector<1x16xf32>
    %29 = vector.shape_cast %26 : vector<1x16xf32> to vector<1x1x16xf32>
    tpu.vector_store %arg4[%c0_18, %c0_19, %c8], %29 {strides = array<i32>} : memref<1x3x56xf32, #tpu.memory_space<vmem>>, vector<1x1x16xf32>,
    %30 = vector.extract_strided_slice %9 {offsets = [0, 4, 8], sizes = [1, 6, 16], strides = [1, 1, 1]} : vector<1x16x56xf32> to vector<1x6x16xf32>
    %cst_20 = arith.constant dense<0xFF800000> : vector<1x16xf32>
    %31 = vector.multi_reduction <maximumf>, %30, %cst_20 [1] : vector<1x6x16xf32> to vector<1x16xf32>
    %c0_21 = arith.constant 0 : index
    %c1_22 = arith.constant 1 : index
    %c8_23 = arith.constant 8 : index
    %32 = vector.load %arg4[%c0_21, %c1_22, %c8_23] : memref<1x3x56xf32, #tpu.memory_space<vmem>>, vector<1x1x16xf32>
    %33 = vector.shape_cast %32 : vector<1x1x16xf32> to vector<1x16xf32>
    %34 = vector.shape_cast %31 : vector<1x16xf32> to vector<1x1x16xf32>
    tpu.vector_store %arg4[%c0_21, %c1_22, %c8_23], %34 {strides = array<i32>} : memref<1x3x56xf32, #tpu.memory_space<vmem>>, vector<1x1x16xf32>,
    %35 = vector.extract_strided_slice %9 {offsets = [0, 9, 8], sizes = [1, 5, 16], strides = [1, 1, 1]} : vector<1x16x56xf32> to vector<1x5x16xf32>
    %cst_24 = arith.constant dense<0xFF800000> : vector<1x16xf32>
    %36 = vector.multi_reduction <maximumf>, %35, %cst_24 [1] : vector<1x5x16xf32> to vector<1x16xf32>
    %c0_25 = arith.constant 0 : index
    %c2_26 = arith.constant 2 : index
    %c8_27 = arith.constant 8 : index
    %37 = vector.load %arg4[%c0_25, %c2_26, %c8_27] : memref<1x3x56xf32, #tpu.memory_space<vmem>>, vector<1x1x16xf32>
    %38 = vector.shape_cast %37 : vector<1x1x16xf32> to vector<1x16xf32>
    %39 = vector.shape_cast %36 : vector<1x16xf32> to vector<1x1x16xf32>
    tpu.vector_store %arg4[%c0_25, %c2_26, %c8_27], %39 {strides = array<i32>} : memref<1x3x56xf32, #tpu.memory_space<vmem>>, vector<1x1x16xf32>,
    %40 = vector.extract_strided_slice %9 {offsets = [0, 0, 24], sizes = [1, 5, 32], strides = [1, 1, 1]} : vector<1x16x56xf32> to vector<1x5x32xf32>
    %cst_28 = arith.constant dense<0xFF800000> : vector<1x32xf32>
    %41 = vector.multi_reduction <maximumf>, %40, %cst_28 [1] : vector<1x5x32xf32> to vector<1x32xf32>
    %c0_29 = arith.constant 0 : index
    %c0_30 = arith.constant 0 : index
    %c24 = arith.constant 24 : index
    %42 = vector.load %arg4[%c0_29, %c0_30, %c24] : memref<1x3x56xf32, #tpu.memory_space<vmem>>, vector<1x1x32xf32>
    %43 = vector.shape_cast %42 : vector<1x1x32xf32> to vector<1x32xf32>
    %44 = vector.shape_cast %41 : vector<1x32xf32> to vector<1x1x32xf32>
    tpu.vector_store %arg4[%c0_29, %c0_30, %c24], %44 {strides = array<i32>} : memref<1x3x56xf32, #tpu.memory_space<vmem>>, vector<1x1x32xf32>,
    %45 = vector.extract_strided_slice %9 {offsets = [0, 4, 24], sizes = [1, 5, 32], strides = [1, 1, 1]} : vector<1x16x56xf32> to vector<1x5x32xf32>
    %cst_31 = arith.constant dense<0xFF800000> : vector<1x32xf32>
    %46 = vector.multi_reduction <maximumf>, %45, %cst_31 [1] : vector<1x5x32xf32> to vector<1x32xf32>
    %c0_32 = arith.constant 0 : index
    %c1_33 = arith.constant 1 : index
    %c24_34 = arith.constant 24 : index
    %47 = vector.load %arg4[%c0_32, %c1_33, %c24_34] : memref<1x3x56xf32, #tpu.memory_space<vmem>>, vector<1x1x32xf32>
    %48 = vector.shape_cast %47 : vector<1x1x32xf32> to vector<1x32xf32>
    %49 = vector.shape_cast %46 : vector<1x32xf32> to vector<1x1x32xf32>
    tpu.vector_store %arg4[%c0_32, %c1_33, %c24_34], %49 {strides = array<i32>} : memref<1x3x56xf32, #tpu.memory_space<vmem>>, vector<1x1x32xf32>,
    %50 = vector.extract_strided_slice %9 {offsets = [0, 8, 24], sizes = [1, 5, 32], strides = [1, 1, 1]} : vector<1x16x56xf32> to vector<1x5x32xf32>
    %cst_35 = arith.constant dense<0xFF800000> : vector<1x32xf32>
    %51 = vector.multi_reduction <maximumf>, %50, %cst_35 [1] : vector<1x5x32xf32> to vector<1x32xf32>
    %c0_36 = arith.constant 0 : index
    %c2_37 = arith.constant 2 : index
    %c24_38 = arith.constant 24 : index
    %52 = vector.load %arg4[%c0_36, %c2_37, %c24_38] : memref<1x3x56xf32, #tpu.memory_space<vmem>>, vector<1x1x32xf32>
    %53 = vector.shape_cast %52 : vector<1x1x32xf32> to vector<1x32xf32>
    %54 = vector.shape_cast %51 : vector<1x32xf32> to vector<1x1x32xf32>
    tpu.vector_store %arg4[%c0_36, %c2_37, %c24_38], %54 {strides = array<i32>} : memref<1x3x56xf32, #tpu.memory_space<vmem>>, vector<1x1x32xf32>,
    return
  }
  func.func @transform_0(%arg0: i32) -> (i32, i32, i32) {
    %c0_i32 = arith.constant 0 : i32
    %c0_i32_0 = arith.constant 0 : i32
    %c0_i32_1 = arith.constant 0 : i32
    return %arg0, %c0_i32, %c0_i32_0 : i32, i32, i32
  }
  func.func @transform_1(%arg0: i32) -> (i32, i32) {
    %c0_i32 = arith.constant 0 : i32
    %c0_i32_0 = arith.constant 0 : i32
    %c0_i32_1 = arith.constant 0 : i32
    return %c0_i32, %c0_i32_0 : i32, i32
  }
  func.func @transform_2(%arg0: i32) -> (i32, i32) {
    %c0_i32 = arith.constant 0 : i32
    %c0_i32_0 = arith.constant 0 : i32
    %c0_i32_1 = arith.constant 0 : i32
    return %c0_i32, %c0_i32_0 : i32, i32
  }
  func.func @transform_3(%arg0: i32) -> (i32, i32, i32) {
    %c0_i32 = arith.constant 0 : i32
    %c0_i32_0 = arith.constant 0 : i32
    %c0_i32_1 = arith.constant 0 : i32
    return %arg0, %c0_i32, %c0_i32_0 : i32, i32, i32
  }
}

</mosaic_0001>

<llo_original>
// kernel: tpu_custom_call.1
$region0: #{tpu_custom_call.1}
  #allocation0 [shape = 'u32[]', space=smem, size = 0x4, offset = 0x4, fixed_abs, tag = 'smem constant byte address 0x4 - core index']
  #allocation1 [shape = 'u32[144,128]{1,0:T(1,128)}', space=vmem, size = 0x12000, scoped, tag = 'internal scratch']
  %s0 = inlined_call_operand.hbm [shape: f32[2,16,16], index: 0, kind: input, shape index: {}]
  %s1 = inlined_call_operand.hbm [shape: f32[16,56], index: 1, kind: input, shape index: {}]
  %s2 = inlined_call_operand.vmem [shape: f32[1,56], index: 2, kind: input, shape index: {}]
  %s3 = inlined_call_operand.vmem [shape: f32[2,3,56], index: 3, kind: output, shape index: {}]
  %s4 = sld [smem:[#allocation0]]
  $region53: #{tpu_custom_call.1} parent=0
    _
  %s6 = ssub.s32 1, %s4
  %s7 = scalar_select 0, %s6, %s4
  $region1: #{tpu_custom_call.1} parent=0
    #allocation2 [shape = 'u8[16384]{0}', space=vmem, size = 0x4000, scoped, tag = 'input window, operand 0']
    #allocation3 [shape = 's32[2]{0}', space=sflag, size = 0x8, scoped, tag = 'scoped memory for tpu_custom_call.1']
    #allocation4 [shape = 'u8[8192]{0}', space=vmem, size = 0x2000, scoped, tag = 'input window, operand 1, single buffered']
    #allocation5 [shape = 's32[1]{0}', space=sflag, size = 0x4, scoped, tag = 'scoped memory for tpu_custom_call.1']
    %8 = vsyncpa [#allocation3], 0
    %s9 = scalar_lea.sflag [#allocation3], 1
    %10 = vsyncpa %s9, 0
    %11 = vsyncpa [#allocation5], 0
    loop: start=0, step=1, limit=4
    $region2: #{tpu_custom_call.1} parent=1 // loop_pre_header
      _
    $region3: #{tpu_custom_call.1} parent=1 // loop_header
      %s13 = sphi 0, %s17
      %p14 = scmp.ge.s32.totalorder %s13, 4
      %s23 = sphi 0, %s25
      %s26 = sphi 0, %s23
      %s27 = sphi 0, %s26
      %s43 = sphi 0, %s27
      %s47 = sphi 0, %s47
      %s49 = sphi 0, %s47
      %s50 = sphi 0, %s49
      %s64 = sphi 0, %s50
      %s68 = sphi 0, %s68
      %s70 = sphi 0, %s68
      %s71 = sphi 0, %s70
      %s85 = sphi 0, %s71
      %s91 = sphi 0, %s93
      %s94 = sphi 0, %s91
      %s95 = sphi 0, %s94
      %s111 = sphi 0, %s95
    $region4: #{tpu_custom_call.1} parent=1 // loop_header_branch
      %16 = sbr.rel (%p14) target = $region8
    $region5: #{tpu_custom_call.1} parent=1 // loop_body
      %s18 = ssub.s32 %s13, 1
      %s19 = ssub.s32 %s13, 2
      %s20 = sadd.s32 %s13, 1
      %s21 = ssub.s32 %s13, %s20
      %p22 = scmp.eq.s32.totalorder %s21, 0
      %s24 = sadd.s32 %s23, 1
      %s25 = scalar_select %p22, %s23, %s24
      %p28 = pneg %p22
      %p29 = scmp.eq.s32.totalorder %s13, 1
      %p30 = por %p28, %p29
      %p31 = scmp.ne.s32.totalorder %s23, %s26
      %p32 = scmp.eq.s32.totalorder %s13, 0
      %p33 = por %p31, %p32
      %p34 = scmp.ne.s32.totalorder %s23, %s26
      %p35 = scmp.eq.s32.totalorder %s18, 1
      %p36 = por %p34, %p35
      %p37 = scmp.ne.s32.totalorder %s26, %s27
      %p38 = scmp.eq.s32.totalorder %s18, 0
      %p39 = por %p37, %p38
      %p40 = scmp.ne.s32.totalorder %s26, %s27
      %p41 = scmp.eq.s32.totalorder %s19, 1
      %p42 = por %p40, %p41
      %p44 = scmp.ne.s32.totalorder %s27, %s43
      %p45 = scmp.eq.s32.totalorder %s19, 0
      %p46 = por %p44, %p45
      %s48 = sadd.s32 %s47, 1
      %p51 = scmp.eq.s32.totalorder %s13, 1
      %p52 = scmp.ne.s32.totalorder %s47, %s49
      %p53 = scmp.eq.s32.totalorder %s13, 0
      %p54 = por %p52, %p53
      %p55 = scmp.ne.s32.totalorder %s47, %s49
      %p56 = scmp.eq.s32.totalorder %s18, 1
      %p57 = por %p55, %p56
      %p58 = scmp.ne.s32.totalorder %s49, %s50
      %p59 = scmp.eq.s32.totalorder %s18, 0
      %p60 = por %p58, %p59
      %p61 = scmp.ne.s32.totalorder %s49, %s50
      %p62 = scmp.eq.s32.totalorder %s19, 1
      %p63 = por %p61, %p62
      %p65 = scmp.ne.s32.totalorder %s50, %s64
      %p66 = scmp.eq.s32.totalorder %s19, 0
      %p67 = por %p65, %p66
      %s69 = sadd.s32 %s68, 1
      %p72 = scmp.eq.s32.totalorder %s13, 1
      %p73 = scmp.ne.s32.totalorder %s68, %s70
      %p74 = scmp.eq.s32.totalorder %s13, 0
      %p75 = por %p73, %p74
      %p76 = scmp.ne.s32.totalorder %s68, %s70
      %p77 = scmp.eq.s32.totalorder %s18, 1
      %p78 = por %p76, %p77
      %p79 = scmp.ne.s32.totalorder %s70, %s71
      %p80 = scmp.eq.s32.totalorder %s18, 0
      %p81 = por %p79, %p80
      %p82 = scmp.ne.s32.totalorder %s70, %s71
      %p83 = scmp.eq.s32.totalorder %s19, 1
      %p84 = por %p82, %p83
      %p86 = scmp.ne.s32.totalorder %s71, %s85
      %p87 = scmp.eq.s32.totalorder %s19, 0
      %p88 = por %p86, %p87
      %s89 = ssub.s32 %s13, %s20
      %p90 = scmp.eq.s32.totalorder %s89, 0
      %s92 = sadd.s32 %s91, 1
      %s93 = scalar_select %p90, %s91, %s92
      %p96 = pneg %p90
      %p97 = scmp.eq.s32.totalorder %s13, 1
      %p98 = por %p96, %p97
      %p99 = scmp.ne.s32.totalorder %s91, %s94
      %p100 = scmp.eq.s32.totalorder %s13, 0
      %p101 = por %p99, %p100
      %p102 = scmp.ne.s32.totalorder %s91, %s94
      %p103 = scmp.eq.s32.totalorder %s18, 1
      %p104 = por %p102, %p103
      %p105 = scmp.ne.s32.totalorder %s94, %s95
      %p106 = scmp.eq.s32.totalorder %s18, 0
      %p107 = por %p105, %p106
      %p108 = scmp.ne.s32.totalorder %s94, %s95
      %p109 = scmp.eq.s32.totalorder %s19, 1
      %p110 = por %p108, %p109
      %p112 = scmp.ne.s32.totalorder %s95, %s111
      %p113 = scmp.eq.s32.totalorder %s19, 0
      %p114 = por %p112, %p113
      %p115 = scmp.le.s32.totalorder 1, %s13
      %p116 = scmp.lt.s32.totalorder %s13, 3
      %p117 = pnand %p115, %p116
      %p118 = pneg %p117
      // Predicated region
      $region9: #{tpu_custom_call.1} parent=5 // pred_check
        _
      $region10: #{tpu_custom_call.1} parent=5 // pred_check_branch
        %120 = sbr.rel (%p117) target = $region12
      $region11: #{tpu_custom_call.1} parent=5 // pred_region
        %s121 = ssub.s32 %s13, 1
        // Predicated region
        $region13: #{tpu_custom_call.1} parent=11 // pred_check
          %p122 = pneg %p60
        $region14: #{tpu_custom_call.1} parent=11 // pred_check_branch
          %124 = sbr.rel (%p122) target = $region16
        $region15: #{tpu_custom_call.1} parent=11 // pred_region
          %s126 = ssub.s32 256, 256
          %127 = vsyncadd [#allocation5], %s126
          %s128 = sshll.u32 [#allocation4], 4
          %s129 = int_to_ptr.vmem [resolvable:$true] %s128
          %134 = dma.hbm_to_vmem [thread:$0]  %s1, 256, %s129, [#allocation5], 128, 128, 8
        $region16: #{tpu_custom_call.1} parent=11 // pred_fallthru
          _
        // Predicated region
        $region17: #{tpu_custom_call.1} parent=11 // pred_check
          %p135 = pneg %p81
        $region18: #{tpu_custom_call.1} parent=11 // pred_check_branch
          %137 = sbr.rel (%p135) target = $region20
        $region19: #{tpu_custom_call.1} parent=11 // pred_region
          _
        $region20: #{tpu_custom_call.1} parent=11 // pred_fallthru
          _
      $region12: #{tpu_custom_call.1} parent=5 // pred_fallthru
        _
      %p138 = scmp.lt.s32.totalorder %s13, 2
      // Predicated region
      $region21: #{tpu_custom_call.1} parent=5 // pred_check
        %p139 = pneg %p138
      $region22: #{tpu_custom_call.1} parent=5 // pred_check_branch
        %141 = sbr.rel (%p139) target = $region24
      $region23: #{tpu_custom_call.1} parent=5 // pred_region
        // Predicated region
        $region25: #{tpu_custom_call.1} parent=23 // pred_check
          %p142 = pneg %p33
        $region26: #{tpu_custom_call.1} parent=23 // pred_check_branch
          %144 = sbr.rel (%p142) target = $region28
        $region27: #{tpu_custom_call.1} parent=23 // pred_region
          %s145 = sand.u32 %s23, 1
          %s146 = scalar_lea.sflag [#allocation3], %s145
          %s147 = sand.u32 %s23, 1
          %s148 = smul.addr %s147, 16
          %s149 = scalar_lea.vmem [#allocation2], %s148
          %s151 = ssub.s32 256, 256
          %152 = vsyncadd %s146, %s151
          %s153 = smul.addr %s13, 2
          %s154 = smul.addr %s153, 128
          %s155 = scalar_lea.hbm %s0, %s154
          %s156 = sshll.u32 %s149, 4
          %s157 = int_to_ptr.vmem [resolvable:$true] %s156
          %162 = dma.hbm_to_vmem [thread:$0]  %s155, 256, %s157, %s146, 128, 128, 8
        $region28: #{tpu_custom_call.1} parent=23 // pred_fallthru
          _
      $region24: #{tpu_custom_call.1} parent=5 // pred_fallthru
        _
      %p163 = scmp.le.s32.totalorder 1, %s13
      %p164 = scmp.lt.s32.totalorder %s13, 3
      %p165 = pnand %p163, %p164
      %p166 = pneg %p165
      // Predicated region
      $region29: #{tpu_custom_call.1} parent=5 // pred_check
        _
      $region30: #{tpu_custom_call.1} parent=5 // pred_check_branch
        %168 = sbr.rel (%p165) target = $region32
      $region31: #{tpu_custom_call.1} parent=5 // pred_region
        %s169 = ssub.s32 %s13, 1
        %s170 = sand.u32 %s26, 1
        %s171 = scalar_lea.sflag [#allocation3], %s170
        %s172 = sand.u32 %s26, 1
        %s173 = smul.addr %s172, 16
        %s174 = scalar_lea.vmem [#allocation2], %s173
        // Predicated region
        $region33: #{tpu_custom_call.1} parent=31 // pred_check
          %p175 = pneg %p39
        $region34: #{tpu_custom_call.1} parent=31 // pred_check_branch
          %177 = sbr.rel (%p175) target = $region36
        $region35: #{tpu_custom_call.1} parent=31 // pred_region
          %178 = dma.done %s171, 256
        $region36: #{tpu_custom_call.1} parent=31 // pred_fallthru
          _
        // Predicated region
        $region37: #{tpu_custom_call.1} parent=31 // pred_check
          %p179 = pneg %p60
        $region38: #{tpu_custom_call.1} parent=31 // pred_check_branch
          %181 = sbr.rel (%p179) target = $region40
        $region39: #{tpu_custom_call.1} parent=31 // pred_region
          %182 = dma.done [#allocation5], 256
        $region40: #{tpu_custom_call.1} parent=31 // pred_fallthru
          _
        %s183 = sand.u32 %s26, 1
        %s184 = scalar_lea.sflag [#allocation3], %s183
        %s185 = sand.u32 %s26, 1
        %s186 = smul.addr %s185, 16
        %s187 = scalar_lea.vmem [#allocation2], %s186
        %p188 = pneg %p39
        %p189 = pneg %p36
        %p190 = pneg %p60
        %p191 = pneg %p57
        %p192 = pneg %p81
        %p193 = pneg %p78
        %p194 = pneg %p107
        %p195 = pneg %p104
        %p196 = scmp.lt.s32.totalorder %s18, 1
        %s197 = scalar_select %p196, %s18, 1
        %s198 = smul.addr %s197, 4
        %s199 = scalar_lea.vmem %s3, %s198
        %p200 = scmp.lt.s32.totalorder %s18, 1
        %s201 = scalar_select %p200, %s18, 1
        %s202 = smul.addr %s201, 4
        %s203 = scalar_lea.vmem %s3, %s202
        %v204 = vld [vmem:[%s174] sm:$0xff]
        %v205 = vld [vmem:[%s174 + $0x8] sm:$0xff]
        %v206 = vld [vmem:[#allocation4] sm:$0xff]
        %v207 = vld [vmem:[#allocation4 + $0x8] sm:$0xff]
        %v208 = vld [vmem:[%s2] sm:$0x1]
        %v210 = vlaneseq
        %v211 = vshrl.u32 %v210, 7
        %v212 = vsub.s32 0, %v211
        %v213 = vrot.slane %v208, %v212
        %vm215 = vcmask 130048
        %v217 = vsel %vm215, %v204, 0
        %v220 = vsel %vm215, %v205, 0
        %222 = vmatprep.subr.mxu0 0.0
        %223 = vmatpush1.msra.mxu0 %v206
        %224 = vmatprep.subr.mxu0 0.0
        %225 = vmatpush1.msra.mxu0 %v207
        %226 = vmatprep.subr.mxu0 0.0
        %227 = vmatpush1.msra.mxu0 0.0
        %228 = vmatprep.subr.mxu0 0.0
        %229 = vmatpush1.msra.mxu0 0.0
        %230 = vmatprep.subr.mxu0 0.0
        %231 = vmatpush1.msra.mxu0 0.0
        %232 = vmatprep.subr.mxu0 0.0
        %233 = vmatpush1.msra.mxu0 0.0
        %234 = vmatprep.subr.mxu0 0.0
        %235 = vmatpush1.msra.mxu0 0.0
        %236 = vmatprep.subr.mxu0 0.0
        %237 = vmatpush1.msra.mxu0 0.0
        %238 = vmatprep.subr.mxu0 0.0
        %239 = vmatpush1.msra.mxu0 0.0
        %240 = vmatprep.subr.mxu0 0.0
        %241 = vmatpush1.msra.mxu0 0.0
        %242 = vmatprep.subr.mxu0 0.0
        %243 = vmatpush1.msra.mxu0 0.0
        %244 = vmatprep.subr.mxu0 0.0
        %245 = vmatpush1.msra.mxu0 0.0
        %246 = vmatprep.subr.mxu0 0.0
        %247 = vmatpush1.msra.mxu0 0.0
        %248 = vmatprep.subr.mxu0 0.0
        %249 = vmatpush1.msra.mxu0 0.0
        %250 = vmatprep.subr.mxu0 0.0
        %251 = vmatpush1.msra.mxu0 0.0
        %252 = vmatprep.subr.mxu0 0.0
        %253 = vmatpush1.msra.mxu0 0.0
        %254 = vmatprep.subr.mxu0 0.0
        %255 = vmatpush1.msra.mxu0 0.0
        %256 = vmatprep.subr.mxu0 0.0
        %257 = vmatpush1.msra.mxu0 0.0
        %258 = vmatprep.subr.mxu0 0.0
        %259 = vmatpush1.msra.mxu0 0.0
        %260 = vmatprep.subr.mxu0 0.0
        %261 = vmatpush1.msra.mxu0 0.0
        %262 = vmatprep.subr.mxu0 0.0
        %263 = vmatpush1.msra.mxu0 0.0
        %264 = vmatprep.subr.mxu0 0.0
        %265 = vmatpush1.msra.mxu0 0.0
        %266 = vmatprep.subr.mxu0 0.0
        %267 = vmatpush1.msra.mxu0 0.0
        %268 = vmatprep.subr.mxu0 0.0
        %269 = vmatpush1.msra.mxu0 0.0
        %270 = vmatprep.subr.mxu0 0.0
        %271 = vmatpush1.msra.mxu0 0.0
        %272 = vmatprep.subr.mxu0 0.0
        %273 = vmatpush1.msra.mxu0 0.0
        %274 = vmatprep.subr.mxu0 0.0
        %275 = vmatpush1.msra.mxu0 0.0
        %276 = vmatprep.subr.mxu0 0.0
        %277 = vmatpush1.msra.mxu0 0.0
        %278 = vmatprep.subr.mxu0 0.0
        %279 = vmatpush1.msra.mxu0 0.0
        %280 = vmatprep.subr.mxu0 0.0
        %281 = vmatpush1.msra.mxu0 0.0
        %282 = vmatprep.subr.mxu0 0.0
        %283 = vmatpush1.msra.mxu0 0.0
        %284 = vmatprep.subr.mxu0 0.0
        %285 = vmatpush1.msra.mxu0 0.0
        %286 = vmatprep.mubr.f32.mxu0 0.0
        %287 = vmatmul.mubr.f32.gmra.mrb[0].mxu0 %v217
        %v288 = vpop.f32.mrb[0].mxu0
        %v289 = vadd.f32 %v213, %v288
        %v290 = vpop.f32.mrb[0].mxu0
        %291 = vmatprep.mubr.f32.mxu0 0.0
        %292 = vmatmul.mubr.f32.gmra.mrb[0].mxu0 %v220
        %v293 = vpop.f32.mrb[0].mxu0
        %v294 = vadd.f32 %v213, %v293
        %v295 = vpop.f32.mrb[0].mxu0
        %296 = vdwg.mxu0
        %v297 = vmax.f32 %v289, 0.0
        %v298 = vmax.f32 %v294, 0.0
        %vm299 = vcmask 61440
        %v300 = vsel %vm299, %v297, -inf
        %v301 = vrot.slane %v300, 4
        %v302 = vmax.f32 %v300, %v301
        %v303 = vrot.slane %v302, 2
        %v304 = vmax.f32 %v302, %v303
        %v305 = vrot.slane %v304, 1
        %v306 = vmax.f32 %v304, %v305
        %vm307 = vcmask 57344
        %308 = vst.msk [vmem:[%s203] sm:$0x1] %vm307, %v306
        %vm309 = vcmask 64517
        %v310 = vsel %vm309, %v297, -inf
        %vm311 = vcmask 58368
        %v312 = vsel %vm311, %v298, -inf
        %v313 = vmax.f32 %v310, %v312
        %v314 = vrot.slane %v313, 4
        %v315 = vmax.f32 %v313, %v314
        %v316 = vrot.slane %v315, 2
        %v317 = vmax.f32 %v315, %v316
        %v318 = vrot.slane %v317, 1
        %v319 = vmax.f32 %v317, %v318
        %320 = vst.msk [vmem:[%s203 + $0x1] sm:$0x1] %vm307, %v319
        %vm321 = vcmask 63490
        %v322 = vsel %vm321, %v298, -inf
        %v323 = vrot.slane %v322, 4
        %v324 = vmax.f32 %v322, %v323
        %v325 = vrot.slane %v324, 2
        %v326 = vmax.f32 %v324, %v325
        %v327 = vrot.slane %v326, 1
        %v328 = vmax.f32 %v326, %v327
        %329 = vst.msk [vmem:[%s203 + $0x2] sm:$0x1] %vm307, %v328
        %vm330 = vcmask 192576
        %v331 = vsel %vm330, %v297, -inf
        %v332 = vrot.slane %v331, 4
        %v333 = vmax.f32 %v331, %v332
        %v334 = vrot.slane %v333, 2
        %v335 = vmax.f32 %v333, %v334
        %v336 = vrot.slane %v335, 1
        %v337 = vmax.f32 %v335, %v336
        %vm338 = vcmask 188480
        %339 = vst.msk [vmem:[%s203] sm:$0x1] %vm338, %v337
        %vm340 = vcmask 195652
        %v341 = vsel %vm340, %v297, -inf
        %vm342 = vcmask 189504
        %v343 = vsel %vm342, %v298, -inf
        %v344 = vmax.f32 %v341, %v343
        %v345 = vrot.slane %v344, 4
        %v346 = vmax.f32 %v344, %v345
        %v347 = vrot.slane %v346, 2
        %v348 = vmax.f32 %v346, %v347
        %v349 = vrot.slane %v348, 1
        %v350 = vmax.f32 %v348, %v349
        %351 = vst.msk [vmem:[%s203 + $0x1] sm:$0x1] %vm338, %v350
        %vm352 = vcmask 193601
        %v353 = vsel %vm352, %v298, -inf
        %v354 = vrot.slane %v353, 4
        %v355 = vmax.f32 %v353, %v354
        %v356 = vrot.slane %v355, 2
        %v357 = vmax.f32 %v355, %v356
        %v358 = vrot.slane %v357, 1
        %v359 = vmax.f32 %v357, %v358
        %360 = vst.msk [vmem:[%s203 + $0x2] sm:$0x1] %vm338, %v359
        %vm361 = vcmask 454848
        %v362 = vsel %vm361, %v297, -inf
        %v363 = vrot.slane %v362, 4
        %v364 = vmax.f32 %v362, %v363
        %v365 = vrot.slane %v364, 2
        %v366 = vmax.f32 %v364, %v365
        %v367 = vrot.slane %v366, 1
        %v368 = vmax.f32 %v366, %v367
        %vm369 = vcmask 450752
        %370 = vst.msk [vmem:[%s203] sm:$0x1] %vm369, %v368
        %vm371 = vcmask 457924
        %v372 = vsel %vm371, %v297, -inf
        %v373 = vsel %vm369, %v298, -inf
        %v374 = vmax.f32 %v372, %v373
        %v375 = vrot.slane %v374, 4
        %v376 = vmax.f32 %v374, %v375
        %v377 = vrot.slane %v376, 2
        %v378 = vmax.f32 %v376, %v377
        %v379 = vrot.slane %v378, 1
        %v380 = vmax.f32 %v378, %v379
        %381 = vst.msk [vmem:[%s203 + $0x1] sm:$0x1] %vm369, %v380
        %v382 = vsel %vm361, %v298, -inf
        %v383 = vrot.slane %v382, 4
        %v384 = vmax.f32 %v382, %v383
        %v385 = vrot.slane %v384, 2
        %v386 = vmax.f32 %v384, %v385
        %v387 = vrot.slane %v386, 1
        %v388 = vmax.f32 %v386, %v387
        %389 = vst.msk [vmem:[%s203 + $0x2] sm:$0x1] %vm369, %v388
        %p390 = scmp.lt.s32.totalorder %s18, 1
        %s391 = scalar_select %p390, %s18, 1
        %s392 = smul.addr %s391, 4
        %s393 = scalar_lea.vmem %s3, %s392
        // Predicated region
        $region41: #{tpu_custom_call.1} parent=31 // pred_check
          %p394 = pneg %p104
        $region42: #{tpu_custom_call.1} parent=31 // pred_check_branch
          %396 = sbr.rel (%p394) target = $region44
        $region43: #{tpu_custom_call.1} parent=31 // pred_region
          _
        $region44: #{tpu_custom_call.1} parent=31 // pred_fallthru
          _
      $region32: #{tpu_custom_call.1} parent=5 // pred_fallthru
        _
      %p397 = scmp.le.s32.totalorder 2, %s13
      // Predicated region
      $region45: #{tpu_custom_call.1} parent=5 // pred_check
        %p398 = pneg %p397
      $region46: #{tpu_custom_call.1} parent=5 // pred_check_branch
        %400 = sbr.rel (%p398) target = $region48
      $region47: #{tpu_custom_call.1} parent=5 // pred_region
        %s401 = ssub.s32 %s13, 2
        // Predicated region
        $region49: #{tpu_custom_call.1} parent=47 // pred_check
          %p402 = pneg %p110
        $region50: #{tpu_custom_call.1} parent=47 // pred_check_branch
          %404 = sbr.rel (%p402) target = $region52
        $region51: #{tpu_custom_call.1} parent=47 // pred_region
          %p405 = scmp.lt.s32.totalorder %s19, 1
          %s406 = scalar_select %p405, %s19, 1
          %s407 = smul.addr %s406, 4
          %s408 = scalar_lea.vmem %s3, %s407
        $region52: #{tpu_custom_call.1} parent=47 // pred_fallthru
          _
      $region48: #{tpu_custom_call.1} parent=5 // pred_fallthru
        _
    $region6: #{tpu_custom_call.1} parent=1 // loop_footer
      %s17 = sadd.s32 1, %s13
    $region7: #{tpu_custom_call.1} parent=1 // loop_footer_branch
      %12 = sbr.rel target = $region3
    $region8: #{tpu_custom_call.1} parent=1 // loop_exit
      _
    %409 = vsyncpa [#allocation3], 1
    %s410 = scalar_lea.sflag [#allocation3], 1
    %411 = vsyncpa %s410, 1
    %412 = vsyncpa [#allocation5], 1

</llo_original>
